<compile_context>
chip_gen: v7x
topology: tpu7x:2x2x1
jax: 0.10.0
libtpu: 0.0.40
codegen_flags: <defaults>
</compile_context>

<pallas_src>
import jax
import jax.numpy as jnp
import numpy as np
from jax import lax
from jax.experimental import pallas as pl
from jax.experimental.pallas import tpu as pltpu

N, C, H, W = 2, 4, 16, 16           # inplanes == planes (stride=1, downsample=None)
HP, WP = H + 2, W + 2               # zero-padded spatial dims (3x3 conv, pad=1)
KH = KW = 3
NTAP = KH * KW
CP = 8                              # channels zero-padded to a full sublane group
S_REAL = N * HP * WP                # real flattened padded spatial length = 648
SP = ((S_REAL + 127) // 128) * 128  # lane dim padded to a multiple of 128 = 768
OFF = WP + 1                        # flat offset of the (kh=1,kw=1) "center" tap = 19
EXT = SP + 2 * OFF                  # conv1 output kept in a halo-extended layout
EXT2 = SP + 4 * OFF                 # input extended twice so conv1 taps are in-bounds
EPS = 1e-5                          # nn.BatchNorm2d default eps


def basic_block_kernel(xext_ref, w_ref, bias_ref, mask_ref, out_ref):
    # xext_ref : (CP, EXT2)     f32   zero-extended, flattened padded input (all N)
    # w_ref    : (2, CP, 9*CP)  bf16  BN-scale-folded, tap-stacked conv weights
    # bias_ref : (CP, 2)        f32   folded eval-mode BN biases (conv1, conv2)
    # mask_ref : (1, EXT)       f32   1.0 at real-pixel positions (conv1 layout)
    # out_ref  : (CP, SP)       f32
    xext = xext_ref[...]
    mask = mask_ref[...]
    b1 = bias_ref[:, 0:1]
    b2 = bias_ref[:, 1:2]

    def conv3x3(src, w_stack, out_len):
        # One MXU matmul per conv: stack the 9 lane-shifted views along sublanes
        # (im2col, contraction depth 9*CP = 72), contract in bf16, accumulate f32.
        taps = [src[:, kh * WP + kw: kh * WP + kw + out_len]
                for kh in range(KH) for kw in range(KW)]
        stacked = jnp.concatenate(taps, axis=0).astype(jnp.bfloat16)   # (72, out_len)
        return jnp.dot(w_stack, stacked, preferred_element_type=jnp.float32)

    # conv1 (BN1 scale folded into weights) + bias + relu, computed directly in the
    # OFF-extended layout so conv2's taps are plain static slices; halo / garbage
    # positions are zeroed so conv2 sees proper zero padding.
    y1 = jnp.maximum(conv3x3(xext, w_ref[0], EXT) + b1, 0.0) * mask    # (CP, EXT) f32

    # Residual identity is the un-shifted padded input (zeros at halo lanes).
    identity = xext[:, 2 * OFF:2 * OFF + SP]

    # conv2 (BN2 scale folded) + bias + residual add + relu.  No final mask: the
    # wrapper slices away the halo / lane-padding positions.
    z = conv3x3(y1, w_ref[1], SP) + b2 + identity
    out_ref[...] = jnp.maximum(z, 0.0)


def basic_block_forward(x, w1_oihw, w2_oihw, s1, b1, s2, b2):
    """x: (N, C, H, W) f32; w*: (Cout, Cin, 3, 3) OIHW f32; s*/b*: (C,) folded BN."""
    # ---- layout plumbing (plain JAX, outside the kernel) --------------------
    # NCHW -> zero-pad spatial -> (C, N*HP*WP) lane-dense -> pad channels to CP
    # -> extend lane axis by 2*OFF zeros each side (plus 128-alignment padding).
    xpad = jnp.pad(x, ((0, 0), (0, 0), (1, 1), (1, 1)))
    xflat = jnp.transpose(xpad, (1, 0, 2, 3)).reshape(C, S_REAL)
    xext = jnp.pad(xflat, ((0, CP - C), (2 * OFF, EXT2 - 2 * OFF - S_REAL)))

    def prep_w(w_, scale):
        # Fold BN scale into the conv weight, then pack as (CP, 9*CP):
        #   Wstack[o, t*CP + i] = scale[o] * w[o, i, kh, kw],  t = kh*3 + kw.
        wf = w_ * scale[:, None, None, None]
        wt = jnp.transpose(wf, (2, 3, 0, 1)).reshape(NTAP, C, C)
        wt = jnp.pad(wt, ((0, 0), (0, CP - C), (0, CP - C)))
        return jnp.transpose(wt, (1, 0, 2)).reshape(CP, NTAP * CP)

    w_all = jnp.stack([prep_w(w1_oihw, s1),
                       prep_w(w2_oihw, s2)]).astype(jnp.bfloat16)       # (2, CP, 72)
    bias_all = jnp.stack([jnp.pad(b1, (0, CP - C)),
                          jnp.pad(b2, (0, CP - C))], axis=1)            # (CP, 2)

    # Real-pixel mask in the flattened padded layout (zero on the halo AND on the
    # 648..767 lane padding), shifted by OFF into the conv1-output layout.
    pos = jnp.arange(S_REAL, dtype=jnp.int32) % (HP * WP)
    row = pos // WP
    col = pos % WP
    mask_core = (((row >= 1) & (row <= H) & (col >= 1) & (col <= W))
                 .astype(jnp.float32).reshape(1, S_REAL))
    mask_ext = jnp.pad(mask_core, ((0, 0), (OFF, EXT - OFF - S_REAL)))  # (1, EXT)

    vmem = pl.BlockSpec(memory_space=pltpu.MemorySpace.VMEM)
    out_flat = pl.pallas_call(
        basic_block_kernel,
        out_shape=jax.ShapeDtypeStruct((CP, SP), jnp.float32),
        in_specs=[vmem] * 4,
        out_specs=vmem,
    )(xext, w_all, bias_all, mask_ext)

    # back to NCHW: drop channel / lane padding, un-flatten, drop the spatial halo.
    out = out_flat[:C, :S_REAL].reshape(C, N, HP, WP)[:, :, 1:H + 1, 1:W + 1]
    return jnp.transpose(out, (1, 0, 2, 3))


def ref_basic_block(x, w1, w2, s1, b1, s2, b2):
    """Pure-JAX f32 reference matching the PyTorch forward (eval-mode BN folded)."""
    dn = lax.conv_dimension_numbers(x.shape, w1.shape, ('NCHW', 'OIHW', 'NCHW'))
    y = lax.conv_general_dilated(x, w1, (1, 1), ((1, 1), (1, 1)),
                                 dimension_numbers=dn,
                                 precision=lax.Precision.HIGHEST)
    y = jnp.maximum(y * s1[None, :, None, None] + b1[None, :, None, None], 0.0)
    z = lax.conv_general_dilated(y, w2, (1, 1), ((1, 1), (1, 1)),
                                 dimension_numbers=dn,
                                 precision=lax.Precision.HIGHEST)
    z = z * s2[None, :, None, None] + b2[None, :, None, None]
    return jnp.maximum(z + x, 0.0)


if __name__ == "__main__":
    key = jax.random.PRNGKey(0)
    (kx, k1, k2, kg1, kb1, km1, kv1, kg2, kb2, km2, kv2) = jax.random.split(key, 11)

    x = jax.random.normal(kx, (N, C, H, W), jnp.float32)
    w1 = 0.2 * jax.random.normal(k1, (C, C, 3, 3), jnp.float32)   # conv1.weight (OIHW)
    w2 = 0.2 * jax.random.normal(k2, (C, C, 3, 3), jnp.float32)   # conv2.weight (OIHW)

    # BatchNorm2d parameters / running stats (eval mode), folded to scale & bias.
    gamma1 = 1.0 + 0.1 * jax.random.normal(kg1, (C,), jnp.float32)
    beta1 = 0.1 * jax.random.normal(kb1, (C,), jnp.float32)
    mean1 = 0.1 * jax.random.normal(km1, (C,), jnp.float32)
    var1 = jnp.abs(jax.random.normal(kv1, (C,), jnp.float32)) + 0.5
    gamma2 = 1.0 + 0.1 * jax.random.normal(kg2, (C,), jnp.float32)
    beta2 = 0.1 * jax.random.normal(kb2, (C,), jnp.float32)
    mean2 = 0.1 * jax.random.normal(km2, (C,), jnp.float32)
    var2 = jnp.abs(jax.random.normal(kv2, (C,), jnp.float32)) + 0.5

    s1 = gamma1 / jnp.sqrt(var1 + EPS)
    b1 = beta1 - mean1 * s1
    s2 = gamma2 / jnp.sqrt(var2 + EPS)
    b2 = beta2 - mean2 * s2

    out = basic_block_forward(x, w1, w2, s1, b1, s2, b2)
    out = jax.block_until_ready(out)

    ref = ref_basic_block(x, w1, w2, s1, b1, s2, b2)
    # Tolerance sized for single-pass bf16 MXU feeds (f32 accumulate) vs. the
    # f32/HIGHEST reference; structural bugs would produce O(1) errors.
    np.testing.assert_allclose(np.asarray(out), np.asarray(ref), rtol=3e-2, atol=3e-2)
    print("KERNEL_OK")
</pallas_src>

<mosaic_0001>
module attributes {stable_mosaic.version = 11 : i64} {
  func.func @basic_block_kernel(%arg0: memref<8x844xf32, #tpu.memory_space<vmem>>, %arg1: memref<2x8x72xbf16, #tpu.memory_space<vmem>>, %arg2: memref<8x2xf32, #tpu.memory_space<vmem>>, %arg3: memref<1x806xf32, #tpu.memory_space<vmem>>, %arg4: memref<8x768xf32, #tpu.memory_space<vmem>>) attributes {dimension_semantics = [], scalar_prefetch = 0 : i64, scratch_operands = 0 : i64, tpu.core_type = #tpu.core_type<tc>} {
    %c0 = arith.constant 0 : index
    %c0_0 = arith.constant 0 : index
    %0 = vector.load %arg0[%c0, %c0_0] : memref<8x844xf32, #tpu.memory_space<vmem>>, vector<8x844xf32>
    %c0_1 = arith.constant 0 : index
    %c0_2 = arith.constant 0 : index
    %1 = vector.load %arg3[%c0_1, %c0_2] : memref<1x806xf32, #tpu.memory_space<vmem>>, vector<1x806xf32>
    %c0_3 = arith.constant 0 : index
    %c0_4 = arith.constant 0 : index
    %2 = vector.load %arg2[%c0_3, %c0_4] : memref<8x2xf32, #tpu.memory_space<vmem>>, vector<8x1xf32>
    %c0_5 = arith.constant 0 : index
    %c1 = arith.constant 1 : index
    %3 = vector.load %arg2[%c0_5, %c1] : memref<8x2xf32, #tpu.memory_space<vmem>>, vector<8x1xf32>
    %c0_6 = arith.constant 0 : index
    %c0_7 = arith.constant 0 : index
    %c0_8 = arith.constant 0 : index
    %4 = vector.load %arg1[%c0_6, %c0_7, %c0_8] : memref<2x8x72xbf16, #tpu.memory_space<vmem>>, vector<1x8x72xbf16>
    %5 = vector.shape_cast %4 : vector<1x8x72xbf16> to vector<8x72xbf16>
    %6 = vector.extract_strided_slice %0 {offsets = [0, 0], sizes = [8, 806], strides = [1, 1]} : vector<8x844xf32> to vector<8x806xf32>
    %7 = vector.extract_strided_slice %0 {offsets = [0, 1], sizes = [8, 806], strides = [1, 1]} : vector<8x844xf32> to vector<8x806xf32>
    %8 = vector.extract_strided_slice %0 {offsets = [0, 2], sizes = [8, 806], strides = [1, 1]} : vector<8x844xf32> to vector<8x806xf32>
    %9 = vector.extract_strided_slice %0 {offsets = [0, 18], sizes = [8, 806], strides = [1, 1]} : vector<8x844xf32> to vector<8x806xf32>
    %10 = vector.extract_strided_slice %0 {offsets = [0, 19], sizes = [8, 806], strides = [1, 1]} : vector<8x844xf32> to vector<8x806xf32>
    %11 = vector.extract_strided_slice %0 {offsets = [0, 20], sizes = [8, 806], strides = [1, 1]} : vector<8x844xf32> to vector<8x806xf32>
    %12 = vector.extract_strided_slice %0 {offsets = [0, 36], sizes = [8, 806], strides = [1, 1]} : vector<8x844xf32> to vector<8x806xf32>
    %13 = vector.extract_strided_slice %0 {offsets = [0, 37], sizes = [8, 806], strides = [1, 1]} : vector<8x844xf32> to vector<8x806xf32>
    %14 = vector.extract_strided_slice %0 {offsets = [0, 38], sizes = [8, 806], strides = [1, 1]} : vector<8x844xf32> to vector<8x806xf32>
    %15 = tpu.concatenate %6, %7, %8, %9, %10, %11, %12, %13, %14 in 0 : vector<8x806xf32>, vector<8x806xf32>, vector<8x806xf32>, vector<8x806xf32>, vector<8x806xf32>, vector<8x806xf32>, vector<8x806xf32>, vector<8x806xf32>, vector<8x806xf32> -> vector<72x806xf32>
    %16 = arith.truncf %15 : vector<72x806xf32> to vector<72x806xbf16>
    %cst = arith.constant dense<0.000000e+00> : vector<8x806xf32>
    %17 = tpu.matmul %5, %16, %cst {dimension_numbers = #tpu.dot_dimension_numbers<[1], [0], [0], [1], [0, 0, 1, 1], [], []>} : vector<8x72xbf16>, vector<72x806xbf16>, vector<8x806xf32> -> vector<8x806xf32>
    %18 = vector.broadcast %2 : vector<8x1xf32> to vector<8x806xf32>
    %19 = arith.addf %17, %18 : vector<8x806xf32>
    %cst_9 = arith.constant 0.000000e+00 : f32
    %20 = vector.broadcast %cst_9 : f32 to vector<8x806xf32>
    %21 = arith.maximumf %19, %20 : vector<8x806xf32>
    %22 = vector.broadcast %1 : vector<1x806xf32> to vector<8x806xf32>
    %23 = arith.mulf %21, %22 : vector<8x806xf32>
    %24 = vector.extract_strided_slice %0 {offsets = [0, 38], sizes = [8, 768], strides = [1, 1]} : vector<8x844xf32> to vector<8x768xf32>
    %c1_10 = arith.constant 1 : index
    %c0_11 = arith.constant 0 : index
    %c0_12 = arith.constant 0 : index
    %25 = vector.load %arg1[%c1_10, %c0_11, %c0_12] : memref<2x8x72xbf16, #tpu.memory_space<vmem>>, vector<1x8x72xbf16>
    %26 = vector.shape_cast %25 : vector<1x8x72xbf16> to vector<8x72xbf16>
    %27 = vector.extract_strided_slice %23 {offsets = [0, 0], sizes = [8, 768], strides = [1, 1]} : vector<8x806xf32> to vector<8x768xf32>
    %28 = vector.extract_strided_slice %23 {offsets = [0, 1], sizes = [8, 768], strides = [1, 1]} : vector<8x806xf32> to vector<8x768xf32>
    %29 = vector.extract_strided_slice %23 {offsets = [0, 2], sizes = [8, 768], strides = [1, 1]} : vector<8x806xf32> to vector<8x768xf32>
    %30 = vector.extract_strided_slice %23 {offsets = [0, 18], sizes = [8, 768], strides = [1, 1]} : vector<8x806xf32> to vector<8x768xf32>
    %31 = vector.extract_strided_slice %23 {offsets = [0, 19], sizes = [8, 768], strides = [1, 1]} : vector<8x806xf32> to vector<8x768xf32>
    %32 = vector.extract_strided_slice %23 {offsets = [0, 20], sizes = [8, 768], strides = [1, 1]} : vector<8x806xf32> to vector<8x768xf32>
    %33 = vector.extract_strided_slice %23 {offsets = [0, 36], sizes = [8, 768], strides = [1, 1]} : vector<8x806xf32> to vector<8x768xf32>
    %34 = vector.extract_strided_slice %23 {offsets = [0, 37], sizes = [8, 768], strides = [1, 1]} : vector<8x806xf32> to vector<8x768xf32>
    %35 = vector.extract_strided_slice %23 {offsets = [0, 38], sizes = [8, 768], strides = [1, 1]} : vector<8x806xf32> to vector<8x768xf32>
    %36 = tpu.concatenate %27, %28, %29, %30, %31, %32, %33, %34, %35 in 0 : vector<8x768xf32>, vector<8x768xf32>, vector<8x768xf32>, vector<8x768xf32>, vector<8x768xf32>, vector<8x768xf32>, vector<8x768xf32>, vector<8x768xf32>, vector<8x768xf32> -> vector<72x768xf32>
    %37 = arith.truncf %36 : vector<72x768xf32> to vector<72x768xbf16>
    %cst_13 = arith.constant dense<0.000000e+00> : vector<8x768xf32>
    %38 = tpu.matmul %26, %37, %cst_13 {dimension_numbers = #tpu.dot_dimension_numbers<[1], [0], [0], [1], [0, 0, 1, 1], [], []>} : vector<8x72xbf16>, vector<72x768xbf16>, vector<8x768xf32> -> vector<8x768xf32>
    %39 = vector.broadcast %3 : vector<8x1xf32> to vector<8x768xf32>
    %40 = arith.addf %38, %39 : vector<8x768xf32>
    %41 = arith.addf %40, %24 : vector<8x768xf32>
    %cst_14 = arith.constant 0.000000e+00 : f32
    %42 = vector.broadcast %cst_14 : f32 to vector<8x768xf32>
    %43 = arith.maximumf %41, %42 : vector<8x768xf32>
    %c0_15 = arith.constant 0 : index
    %c0_16 = arith.constant 0 : index
    %44 = vector.load %arg4[%c0_15, %c0_16] : memref<8x768xf32, #tpu.memory_space<vmem>>, vector<8x768xf32>
    tpu.vector_store %arg4[%c0_15, %c0_16], %43 {strides = array<i32>} : memref<8x768xf32, #tpu.memory_space<vmem>>, vector<8x768xf32>,
    return
  }
}

</mosaic_0001>

<llo_original>
// kernel: tpu_custom_call.1
$region0: #{tpu_custom_call.1}
  #allocation0 [shape = 'u32[]', space=smem, size = 0x4, offset = 0x4, fixed_abs, tag = 'smem constant byte address 0x4 - core index']
  #allocation1 [shape = 'u32[144,128]{1,0:T(1,128)}', space=vmem, size = 0x12000, scoped, tag = 'internal scratch']
  %s0 = inlined_call_operand.hbm [shape: f32[8,844], index: 0, kind: input, shape index: {}]
  %s1 = inlined_call_operand.vmem [shape: bf16[2,8,72], index: 1, kind: input, shape index: {}]
  %s2 = inlined_call_operand.vmem [shape: f32[8,2], index: 2, kind: input, shape index: {}]
  %s3 = inlined_call_operand.vmem [shape: f32[1,806], index: 3, kind: input, shape index: {}]
  %s4 = inlined_call_operand.hbm [shape: f32[8,768], index: 4, kind: output, shape index: {}]
  %s5 = sld [smem:[#allocation0]]
  $region30: #{tpu_custom_call.1} parent=0
    _
  %s7 = ssub.s32 1, %s5
  %s8 = scalar_select 0, %s7, %s5
  $region1: #{tpu_custom_call.1} parent=0
    #allocation2 [shape = 'u8[28672]{0}', space=vmem, size = 0x7000, scoped, tag = 'input window, operand 0, single buffered']
    #allocation3 [shape = 's32[1]{0}', space=sflag, size = 0x4, scoped, tag = 'scoped memory for tpu_custom_call.1']
    #allocation4 [shape = 's32[1]{0}', space=sflag, size = 0x4, scoped, tag = 'scoped memory for tpu_custom_call.1']
    #allocation5 [shape = 'u8[24576]{0}', space=vmem, size = 0x6000, scoped, tag = 'output window, operand 0, single buffered']
    %9 = vsyncpa [#allocation3], 0
    %10 = vsyncpa [#allocation4], 0
    // Predicated region
    $region2: #{tpu_custom_call.1} parent=1 // pred_check
      _
    $region3: #{tpu_custom_call.1} parent=1 // pred_check_branch
      %12 = sbr.rel (0) target = $region5
    $region4: #{tpu_custom_call.1} parent=1 // pred_region
      %s14 = ssub.s32 896, 896
      %15 = vsyncadd [#allocation3], %s14
      %s17 = sshll.u32 [#allocation2], 4
      %s18 = int_to_ptr.vmem [resolvable:$true] %s17
      %20 = dma.hbm_to_vmem [thread:$0]  %s0, 896, %s18, [#allocation3]
    $region5: #{tpu_custom_call.1} parent=1 // pred_fallthru
      _
    // Predicated region
    $region6: #{tpu_custom_call.1} parent=1 // pred_check
      _
    $region7: #{tpu_custom_call.1} parent=1 // pred_check_branch
      %22 = sbr.rel (0) target = $region9
    $region8: #{tpu_custom_call.1} parent=1 // pred_region
      _
    $region9: #{tpu_custom_call.1} parent=1 // pred_fallthru
      _
    // Predicated region
    $region10: #{tpu_custom_call.1} parent=1 // pred_check
      _
    $region11: #{tpu_custom_call.1} parent=1 // pred_check_branch
      %24 = sbr.rel (0) target = $region13
    $region12: #{tpu_custom_call.1} parent=1 // pred_region
      _
    $region13: #{tpu_custom_call.1} parent=1 // pred_fallthru
      _
    // Predicated region
    $region14: #{tpu_custom_call.1} parent=1 // pred_check
      _
    $region15: #{tpu_custom_call.1} parent=1 // pred_check_branch
      %26 = sbr.rel (0) target = $region17
    $region16: #{tpu_custom_call.1} parent=1 // pred_region
      _
    $region17: #{tpu_custom_call.1} parent=1 // pred_fallthru
      _
    // Predicated region
    $region18: #{tpu_custom_call.1} parent=1 // pred_check
      _
    $region19: #{tpu_custom_call.1} parent=1 // pred_check_branch
      %28 = sbr.rel (0) target = $region21
    $region20: #{tpu_custom_call.1} parent=1 // pred_region
      %29 = dma.done [#allocation3], 896
    $region21: #{tpu_custom_call.1} parent=1 // pred_fallthru
      _
    %v31 = vld [vmem:[#allocation2] sm:$0xff]
    %v32 = vld [vmem:[#allocation2 + $0x8] sm:$0xff]
    %v33 = vld [vmem:[#allocation2 + $0x10] sm:$0xff]
    %v34 = vld [vmem:[#allocation2 + $0x18] sm:$0xff]
    %v35 = vld [vmem:[#allocation2 + $0x20] sm:$0xff]
    %v36 = vld [vmem:[#allocation2 + $0x28] sm:$0xff]
    %v37 = vld [vmem:[#allocation2 + $0x30] sm:$0xff]
    %v38 = vld [vmem:[%s3] sm:$0x7f]
    %v39 = vld [vmem:[%s2] sm:$0xff]
    %v40 = vld [vmem:[%s1] sm:$0xf]
    %48 = vrot.lane.b32.xlu0 %v31, 127
    %v49 = vpop.permute.xlu0 %48
    %50 = vrot.lane.b32.xlu0 %v32, 127
    %v51 = vpop.permute.xlu0 %50
    %52 = vrot.lane.b32.xlu0 %v33, 127
    %v53 = vpop.permute.xlu0 %52
    %54 = vrot.lane.b32.xlu0 %v34, 127
    %v55 = vpop.permute.xlu0 %54
    %56 = vrot.lane.b32.xlu0 %v35, 127
    %v57 = vpop.permute.xlu0 %56
    %58 = vrot.lane.b32.xlu0 %v36, 127
    %v59 = vpop.permute.xlu0 %58
    %60 = vrot.lane.b32.xlu0 %v37, 127
    %v61 = vpop.permute.xlu0 %60
    %vm62 = vcmask 1039360
    %v63 = vsel %vm62, %v49, %v51
    %v64 = vsel %vm62, %v51, %v53
    %v65 = vsel %vm62, %v53, %v55
    %v66 = vsel %vm62, %v55, %v57
    %v67 = vsel %vm62, %v57, %v59
    %v68 = vsel %vm62, %v59, %v61
    %76 = vrot.lane.b32.xlu0 %v31, 126
    %v77 = vpop.permute.xlu0 %76
    %78 = vrot.lane.b32.xlu0 %v32, 126
    %v79 = vpop.permute.xlu0 %78
    %80 = vrot.lane.b32.xlu0 %v33, 126
    %v81 = vpop.permute.xlu0 %80
    %82 = vrot.lane.b32.xlu0 %v34, 126
    %v83 = vpop.permute.xlu0 %82
    %84 = vrot.lane.b32.xlu0 %v35, 126
    %v85 = vpop.permute.xlu0 %84
    %86 = vrot.lane.b32.xlu0 %v36, 126
    %v87 = vpop.permute.xlu0 %86
    %88 = vrot.lane.b32.xlu0 %v37, 126
    %v89 = vpop.permute.xlu0 %88
    %vm90 = vcmask 1031168
    %v91 = vsel %vm90, %v77, %v79
    %v92 = vsel %vm90, %v79, %v81
    %v93 = vsel %vm90, %v81, %v83
    %v94 = vsel %vm90, %v83, %v85
    %v95 = vsel %vm90, %v85, %v87
    %v96 = vsel %vm90, %v87, %v89
    %104 = vrot.lane.b32.xlu0 %v31, 110
    %v105 = vpop.permute.xlu0 %104
    %106 = vrot.lane.b32.xlu0 %v32, 110
    %v107 = vpop.permute.xlu0 %106
    %108 = vrot.lane.b32.xlu0 %v33, 110
    %v109 = vpop.permute.xlu0 %108
    %110 = vrot.lane.b32.xlu0 %v34, 110
    %v111 = vpop.permute.xlu0 %110
    %112 = vrot.lane.b32.xlu0 %v35, 110
    %v113 = vpop.permute.xlu0 %112
    %114 = vrot.lane.b32.xlu0 %v36, 110
    %v115 = vpop.permute.xlu0 %114
    %116 = vrot.lane.b32.xlu0 %v37, 110
    %v117 = vpop.permute.xlu0 %116
    %vm118 = vcmask 900096
    %v119 = vsel %vm118, %v105, %v107
    %v120 = vsel %vm118, %v107, %v109
    %v121 = vsel %vm118, %v109, %v111
    %v122 = vsel %vm118, %v111, %v113
    %v123 = vsel %vm118, %v113, %v115
    %v124 = vsel %vm118, %v115, %v117
    %132 = vrot.lane.b32.xlu0 %v31, 109
    %v133 = vpop.permute.xlu0 %132
    %134 = vrot.lane.b32.xlu0 %v32, 109
    %v135 = vpop.permute.xlu0 %134
    %136 = vrot.lane.b32.xlu0 %v33, 109
    %v137 = vpop.permute.xlu0 %136
    %138 = vrot.lane.b32.xlu0 %v34, 109
    %v139 = vpop.permute.xlu0 %138
    %140 = vrot.lane.b32.xlu0 %v35, 109
    %v141 = vpop.permute.xlu0 %140
    %142 = vrot.lane.b32.xlu0 %v36, 109
    %v143 = vpop.permute.xlu0 %142
    %144 = vrot.lane.b32.xlu0 %v37, 109
    %v145 = vpop.permute.xlu0 %144
    %vm146 = vcmask 891904
    %v147 = vsel %vm146, %v133, %v135
    %v148 = vsel %vm146, %v135, %v137
    %v149 = vsel %vm146, %v137, %v139
    %v150 = vsel %vm146, %v139, %v141
    %v151 = vsel %vm146, %v141, %v143
    %v152 = vsel %vm146, %v143, %v145
    %160 = vrot.lane.b32.xlu0 %v31, 108
    %v161 = vpop.permute.xlu0 %160
    %162 = vrot.lane.b32.xlu0 %v32, 108
    %v163 = vpop.permute.xlu0 %162
    %164 = vrot.lane.b32.xlu0 %v33, 108
    %v165 = vpop.permute.xlu0 %164
    %166 = vrot.lane.b32.xlu0 %v34, 108
    %v167 = vpop.permute.xlu0 %166
    %168 = vrot.lane.b32.xlu0 %v35, 108
    %v169 = vpop.permute.xlu0 %168
    %170 = vrot.lane.b32.xlu0 %v36, 108
    %v171 = vpop.permute.xlu0 %170
    %172 = vrot.lane.b32.xlu0 %v37, 108
    %v173 = vpop.permute.xlu0 %172
    %vm174 = vcmask 883712
    %v175 = vsel %vm174, %v161, %v163
    %v176 = vsel %vm174, %v163, %v165
    %v177 = vsel %vm174, %v165, %v167
    %v178 = vsel %vm174, %v167, %v169
    %v179 = vsel %vm174, %v169, %v171
    %v180 = vsel %vm174, %v171, %v173
    %188 = vrot.lane.b32.xlu0 %v31, 92
    %v189 = vpop.permute.xlu0 %188
    %190 = vrot.lane.b32.xlu0 %v32, 92
    %v191 = vpop.permute.xlu0 %190
    %192 = vrot.lane.b32.xlu0 %v33, 92
    %v193 = vpop.permute.xlu0 %192
    %194 = vrot.lane.b32.xlu0 %v34, 92
    %v195 = vpop.permute.xlu0 %194
    %196 = vrot.lane.b32.xlu0 %v35, 92
    %v197 = vpop.permute.xlu0 %196
    %198 = vrot.lane.b32.xlu0 %v36, 92
    %v199 = vpop.permute.xlu0 %198
    %200 = vrot.lane.b32.xlu0 %v37, 92
    %v201 = vpop.permute.xlu0 %200
    %vm202 = vcmask 752640
    %v203 = vsel %vm202, %v189, %v191
    %v204 = vsel %vm202, %v191, %v193
    %v205 = vsel %vm202, %v193, %v195
    %v206 = vsel %vm202, %v195, %v197
    %v207 = vsel %vm202, %v197, %v199
    %v208 = vsel %vm202, %v199, %v201
    %216 = vrot.lane.b32.xlu0 %v31, 91
    %v217 = vpop.permute.xlu0 %216
    %218 = vrot.lane.b32.xlu0 %v32, 91
    %v219 = vpop.permute.xlu0 %218
    %220 = vrot.lane.b32.xlu0 %v33, 91
    %v221 = vpop.permute.xlu0 %220
    %222 = vrot.lane.b32.xlu0 %v34, 91
    %v223 = vpop.permute.xlu0 %222
    %224 = vrot.lane.b32.xlu0 %v35, 91
    %v225 = vpop.permute.xlu0 %224
    %226 = vrot.lane.b32.xlu0 %v36, 91
    %v227 = vpop.permute.xlu0 %226
    %228 = vrot.lane.b32.xlu0 %v37, 91
    %v229 = vpop.permute.xlu0 %228
    %vm230 = vcmask 744448
    %v231 = vsel %vm230, %v217, %v219
    %v232 = vsel %vm230, %v219, %v221
    %v233 = vsel %vm230, %v221, %v223
    %v234 = vsel %vm230, %v223, %v225
    %v235 = vsel %vm230, %v225, %v227
    %v236 = vsel %vm230, %v227, %v229
    %244 = vrot.lane.b32.xlu0 %v31, 90
    %v245 = vpop.permute.xlu0 %244
    %246 = vrot.lane.b32.xlu0 %v32, 90
    %v247 = vpop.permute.xlu0 %246
    %248 = vrot.lane.b32.xlu0 %v33, 90
    %v249 = vpop.permute.xlu0 %248
    %250 = vrot.lane.b32.xlu0 %v34, 90
    %v251 = vpop.permute.xlu0 %250
    %252 = vrot.lane.b32.xlu0 %v35, 90
    %v253 = vpop.permute.xlu0 %252
    %254 = vrot.lane.b32.xlu0 %v36, 90
    %v255 = vpop.permute.xlu0 %254
    %256 = vrot.lane.b32.xlu0 %v37, 90
    %v257 = vpop.permute.xlu0 %256
    %vm258 = vcmask 736256
    %v259 = vsel %vm258, %v245, %v247
    %v260 = vsel %vm258, %v247, %v249
    %v261 = vsel %vm258, %v249, %v251
    %v262 = vsel %vm258, %v251, %v253
    %v263 = vsel %vm258, %v253, %v255
    %v264 = vsel %vm258, %v255, %v257
    %v272 = vpack.c.bf16 %v63, %v31
    %v273 = vpack.c.bf16 %v64, %v32
    %v274 = vpack.c.bf16 %v65, %v33
    %v275 = vpack.c.bf16 %v66, %v34
    %v276 = vpack.c.bf16 %v67, %v35
    %v277 = vpack.c.bf16 %v68, %v36
    %v278 = vpack.c.bf16 %v61, %v37
    %v279 = vpack.c.bf16 %v119, %v91
    %v280 = vpack.c.bf16 %v120, %v92
    %v281 = vpack.c.bf16 %v121, %v93
    %v282 = vpack.c.bf16 %v122, %v94
    %v283 = vpack.c.bf16 %v123, %v95
    %v284 = vpack.c.bf16 %v124, %v96
    %v285 = vpack.c.bf16 %v117, %v89
    %v286 = vpack.c.bf16 %v175, %v147
    %v287 = vpack.c.bf16 %v176, %v148
    %v288 = vpack.c.bf16 %v177, %v149
    %v289 = vpack.c.bf16 %v178, %v150
    %v290 = vpack.c.bf16 %v179, %v151
    %v291 = vpack.c.bf16 %v180, %v152
    %v292 = vpack.c.bf16 %v173, %v145
    %v293 = vpack.c.bf16 %v231, %v203
    %v294 = vpack.c.bf16 %v232, %v204
    %v295 = vpack.c.bf16 %v233, %v205
    %v296 = vpack.c.bf16 %v234, %v206
    %v297 = vpack.c.bf16 %v235, %v207
    %v298 = vpack.c.bf16 %v236, %v208
    %v299 = vpack.c.bf16 %v229, %v201
    %v300 = vpack.c.bf16 %v259, %v259
    %v301 = vpack.c.bf16 %v260, %v260
    %v302 = vpack.c.bf16 %v261, %v261
    %v303 = vpack.c.bf16 %v262, %v262
    %v304 = vpack.c.bf16 %v263, %v263
    %v305 = vpack.c.bf16 %v264, %v264
    %v306 = vpack.c.bf16 %v257, %v257
    %308 = vset.pattern.permute.xlu0 0
    %309 = vperm.xlu0 %308, %v39
    %v310 = vpop.permute.xlu0 %309
    %vm312 = vcmask 588800
    %v314 = vsel %vm312, %v40, 0
    %vm316 = vcmask 1043456
    %v318 = vsel %vm316, %v300, 0
    %v321 = vsel %vm316, %v301, 0
    %v324 = vsel %vm316, %v302, 0
    %v327 = vsel %vm316, %v303, 0
    %v330 = vsel %vm316, %v304, 0
    %v333 = vsel %vm316, %v305, 0
    %v336 = vsel %vm316, %v306, 0
    %338 = vmatprep.subr.bf16.mxu0 %v273
    %339 = vmatpush1.bf16.msra.mxu0 %v272
    %340 = vmatprep.subr.bf16.mxu0 %v280
    %341 = vmatpush1.bf16.msra.mxu0 %v279
    %342 = vmatprep.subr.bf16.mxu0 %v287
    %343 = vmatpush1.bf16.msra.mxu0 %v286
    %344 = vmatprep.subr.bf16.mxu0 %v294
    %345 = vmatpush1.bf16.msra.mxu0 %v293
    %346 = vmatprep.subr.bf16.mxu0 %v321
    %347 = vmatpush1.bf16.msra.mxu0 %v318
    %348 = vmatprep.subr.bf16.mxu0 0
    %349 = vmatpush1.bf16.msra.mxu0 0
    %350 = vmatprep.subr.bf16.mxu0 0
    %351 = vmatpush1.bf16.msra.mxu0 0
    %352 = vmatprep.subr.bf16.mxu0 0
    %353 = vmatpush1.bf16.msra.mxu0 0
    %354 = vmatprep.subr.bf16.mxu0 0
    %355 = vmatpush1.bf16.msra.mxu0 0
    %356 = vmatprep.subr.bf16.mxu0 0
    %357 = vmatpush1.bf16.msra.mxu0 0
    %358 = vmatprep.subr.bf16.mxu0 0
    %359 = vmatpush1.bf16.msra.mxu0 0
    %360 = vmatprep.subr.bf16.mxu0 0
    %361 = vmatpush1.bf16.msra.mxu0 0
    %362 = vmatprep.subr.bf16.mxu0 0
    %363 = vmatpush1.bf16.msra.mxu0 0
    %364 = vmatprep.subr.bf16.mxu0 0
    %365 = vmatpush1.bf16.msra.mxu0 0
    %366 = vmatprep.subr.bf16.mxu0 0
    %367 = vmatpush1.bf16.msra.mxu0 0
    %368 = vmatprep.subr.bf16.mxu0 0
    %369 = vmatpush1.bf16.msra.mxu0 0
    %370 = vmatprep.mubr.bf16.mxu0 0
    %371 = vmatmul.mubr.bf16.gmra.mrb[0].mxu0 %v314
    %v372 = vpop.f32.mrb[0].mxu0
    %v373 = vadd.f32 %v310, %v372
    %v374 = vpop.f32.mrb[0].mxu0
    %v375 = vadd.f32 %v310, %v374
    %v376 = vpop.f32.mrb[0].mxu0
    %v377 = vpop.f32.mrb[0].mxu0
    %378 = vdwg.mxu0
    %379 = vmatprep.subr.bf16.mxu0 %v275
    %380 = vmatpush1.bf16.msra.mxu0 %v274
    %381 = vmatprep.subr.bf16.mxu0 %v282
    %382 = vmatpush1.bf16.msra.mxu0 %v281
    %383 = vmatprep.subr.bf16.mxu0 %v289
    %384 = vmatpush1.bf16.msra.mxu0 %v288
    %385 = vmatprep.subr.bf16.mxu0 %v296
    %386 = vmatpush1.bf16.msra.mxu0 %v295
    %387 = vmatprep.subr.bf16.mxu0 %v327
    %388 = vmatpush1.bf16.msra.mxu0 %v324
    %389 = vmatprep.subr.bf16.mxu0 0
    %390 = vmatpush1.bf16.msra.mxu0 0
    %391 = vmatprep.subr.bf16.mxu0 0
    %392 = vmatpush1.bf16.msra.mxu0 0
    %393 = vmatprep.subr.bf16.mxu0 0
    %394 = vmatpush1.bf16.msra.mxu0 0
    %395 = vmatprep.subr.bf16.mxu0 0
    %396 = vmatpush1.bf16.msra.mxu0 0
    %397 = vmatprep.subr.bf16.mxu0 0
    %398 = vmatpush1.bf16.msra.mxu0 0
    %399 = vmatprep.subr.bf16.mxu0 0
    %400 = vmatpush1.bf16.msra.mxu0 0
    %401 = vmatprep.subr.bf16.mxu0 0
    %402 = vmatpush1.bf16.msra.mxu0 0
    %403 = vmatprep.subr.bf16.mxu0 0
    %404 = vmatpush1.bf16.msra.mxu0 0
    %405 = vmatprep.subr.bf16.mxu0 0
    %406 = vmatpush1.bf16.msra.mxu0 0
    %407 = vmatprep.subr.bf16.mxu0 0
    %408 = vmatpush1.bf16.msra.mxu0 0
    %409 = vmatprep.subr.bf16.mxu0 0
    %410 = vmatpush1.bf16.msra.mxu0 0
    %411 = vmatprep.mubr.bf16.mxu0 0
    %412 = vmatmul.mubr.bf16.gmra.mrb[0].mxu0 %v314
    %v413 = vpop.f32.mrb[0].mxu0
    %v414 = vadd.f32 %v310, %v413
    %v415 = vpop.f32.mrb[0].mxu0
    %v416 = vadd.f32 %v310, %v415
    %v417 = vpop.f32.mrb[0].mxu0
    %v418 = vpop.f32.mrb[0].mxu0
    %419 = vdwg.mxu0
    %420 = vmatprep.subr.bf16.mxu0 %v277
    %421 = vmatpush1.bf16.msra.mxu0 %v276
    %422 = vmatprep.subr.bf16.mxu0 %v284
    %423 = vmatpush1.bf16.msra.mxu0 %v283
    %424 = vmatprep.subr.bf16.mxu0 %v291
    %425 = vmatpush1.bf16.msra.mxu0 %v290
    %426 = vmatprep.subr.bf16.mxu0 %v298
    %427 = vmatpush1.bf16.msra.mxu0 %v297
    %428 = vmatprep.subr.bf16.mxu0 %v333
    %429 = vmatpush1.bf16.msra.mxu0 %v330
    %430 = vmatprep.subr.bf16.mxu0 0
    %431 = vmatpush1.bf16.msra.mxu0 0
    %432 = vmatprep.subr.bf16.mxu0 0
    %433 = vmatpush1.bf16.msra.mxu0 0
    %434 = vmatprep.subr.bf16.mxu0 0
    %435 = vmatpush1.bf16.msra.mxu0 0
    %436 = vmatprep.subr.bf16.mxu0 0
    %437 = vmatpush1.bf16.msra.mxu0 0
    %438 = vmatprep.subr.bf16.mxu0 0
    %439 = vmatpush1.bf16.msra.mxu0 0
    %440 = vmatprep.subr.bf16.mxu0 0
    %441 = vmatpush1.bf16.msra.mxu0 0
    %442 = vmatprep.subr.bf16.mxu0 0
    %443 = vmatpush1.bf16.msra.mxu0 0
    %444 = vmatprep.subr.bf16.mxu0 0
    %445 = vmatpush1.bf16.msra.mxu0 0
    %446 = vmatprep.subr.bf16.mxu0 0
    %447 = vmatpush1.bf16.msra.mxu0 0
    %448 = vmatprep.subr.bf16.mxu0 0
    %449 = vmatpush1.bf16.msra.mxu0 0
    %450 = vmatprep.subr.bf16.mxu0 0
    %451 = vmatpush1.bf16.msra.mxu0 0
    %452 = vmatprep.mubr.bf16.mxu0 0
    %453 = vmatmul.mubr.bf16.gmra.mrb[0].mxu0 %v314
    %v454 = vpop.f32.mrb[0].mxu0
    %v455 = vadd.f32 %v310, %v454
    %v456 = vpop.f32.mrb[0].mxu0
    %v457 = vadd.f32 %v310, %v456
    %v458 = vpop.f32.mrb[0].mxu0
    %v459 = vpop.f32.mrb[0].mxu0
    %460 = vdwg.mxu0
    %461 = vmatprep.subr.bf16.mxu0 0
    %462 = vmatpush1.bf16.msra.mxu0 %v278
    %463 = vmatprep.subr.bf16.mxu0 0
    %464 = vmatpush1.bf16.msra.mxu0 %v285
    %465 = vmatprep.subr.bf16.mxu0 0
    %466 = vmatpush1.bf16.msra.mxu0 %v292
    %467 = vmatprep.subr.bf16.mxu0 0
    %468 = vmatpush1.bf16.msra.mxu0 %v299
    %469 = vmatprep.subr.bf16.mxu0 0
    %470 = vmatpush1.bf16.msra.mxu0 %v336
    %471 = vmatprep.subr.bf16.mxu0 0
    %472 = vmatpush1.bf16.msra.mxu0 0
    %473 = vmatprep.subr.bf16.mxu0 0
    %474 = vmatpush1.bf16.msra.mxu0 0
    %475 = vmatprep.subr.bf16.mxu0 0
    %476 = vmatpush1.bf16.msra.mxu0 0
    %477 = vmatprep.subr.bf16.mxu0 0
    %478 = vmatpush1.bf16.msra.mxu0 0
    %479 = vmatprep.subr.bf16.mxu0 0
    %480 = vmatpush1.bf16.msra.mxu0 0
    %481 = vmatprep.subr.bf16.mxu0 0
    %482 = vmatpush1.bf16.msra.mxu0 0
    %483 = vmatprep.subr.bf16.mxu0 0
    %484 = vmatpush1.bf16.msra.mxu0 0
    %485 = vmatprep.subr.bf16.mxu0 0
    %486 = vmatpush1.bf16.msra.mxu0 0
    %487 = vmatprep.subr.bf16.mxu0 0
    %488 = vmatpush1.bf16.msra.mxu0 0
    %489 = vmatprep.subr.bf16.mxu0 0
    %490 = vmatpush1.bf16.msra.mxu0 0
    %491 = vmatprep.subr.bf16.mxu0 0
    %492 = vmatpush1.bf16.msra.mxu0 0
    %493 = vmatprep.mubr.bf16.mxu0 0
    %494 = vmatmul.mubr.bf16.gmra.mrb[0].mxu0 %v314
    %v495 = vpop.f32.mrb[0].mxu0
    %v496 = vadd.f32 %v310, %v495
    %v497 = vpop.f32.mrb[0].mxu0
    %v498 = vpop.f32.mrb[0].mxu0
    %v499 = vpop.f32.mrb[0].mxu0
    %500 = vdwg.mxu0
    %v501 = vmax.f32 %v373, 0.0
    %v502 = vmax.f32 %v375, 0.0
    %v503 = vmax.f32 %v414, 0.0
    %v504 = vmax.f32 %v416, 0.0
    %v505 = vmax.f32 %v455, 0.0
    %v506 = vmax.f32 %v457, 0.0
    %v507 = vmax.f32 %v496, 0.0
    %v509 = vlaneseq
    %v510 = vshrl.u32 %v509, 7
    %v511 = vsub.s32 0, %v510
    %v512 = vrot.slane %v38, %v511
    %v513 = vlaneseq
    %v514 = vshrl.u32 %v513, 7
    %v515 = vsub.s32 1, %v514
    %v516 = vrot.slane %v38, %v515
    %v517 = vlaneseq
    %v518 = vshrl.u32 %v517, 7
    %v519 = vsub.s32 2, %v518
    %v520 = vrot.slane %v38, %v519
    %v521 = vlaneseq
    %v522 = vshrl.u32 %v521, 7
    %v523 = vsub.s32 3, %v522
    %v524 = vrot.slane %v38, %v523
    %v525 = vlaneseq
    %v526 = vshrl.u32 %v525, 7
    %v527 = vsub.s32 4, %v526
    %v528 = vrot.slane %v38, %v527
    %v529 = vlaneseq
    %v530 = vshrl.u32 %v529, 7
    %v531 = vsub.s32 5, %v530
    %v532 = vrot.slane %v38, %v531
    %v533 = vlaneseq
    %v534 = vshrl.u32 %v533, 7
    %v535 = vsub.s32 6, %v534
    %v536 = vrot.slane %v38, %v535
    %v544 = vmul.f32 %v501, %v512
    %v545 = vmul.f32 %v502, %v516
    %v546 = vmul.f32 %v503, %v520
    %v547 = vmul.f32 %v504, %v524
    %v548 = vmul.f32 %v505, %v528
    %v549 = vmul.f32 %v506, %v532
    %v550 = vmul.f32 %v507, %v536
    %s551 = scalar_lea.vmem %s1, 4
    %v552 = vld [vmem:[%s551] sm:$0xf]
    %560 = vrot.lane.b32.xlu0 %v544, 127
    %v561 = vpop.permute.xlu0 %560
    %562 = vrot.lane.b32.xlu0 %v545, 127
    %v563 = vpop.permute.xlu0 %562
    %564 = vrot.lane.b32.xlu0 %v546, 127
    %v565 = vpop.permute.xlu0 %564
    %566 = vrot.lane.b32.xlu0 %v547, 127
    %v567 = vpop.permute.xlu0 %566
    %568 = vrot.lane.b32.xlu0 %v548, 127
    %v569 = vpop.permute.xlu0 %568
    %570 = vrot.lane.b32.xlu0 %v549, 127
    %v571 = vpop.permute.xlu0 %570
    %572 = vrot.lane.b32.xlu0 %v550, 127
    %v573 = vpop.permute.xlu0 %572
    %v574 = vsel %vm62, %v561, %v563
    %v575 = vsel %vm62, %v563, %v565
    %v576 = vsel %vm62, %v565, %v567
    %v577 = vsel %vm62, %v567, %v569
    %v578 = vsel %vm62, %v569, %v571
    %v579 = vsel %vm62, %v571, %v573
    %586 = vrot.lane.b32.xlu0 %v544, 126
    %v587 = vpop.permute.xlu0 %586
    %588 = vrot.lane.b32.xlu0 %v545, 126
    %v589 = vpop.permute.xlu0 %588
    %590 = vrot.lane.b32.xlu0 %v546, 126
    %v591 = vpop.permute.xlu0 %590
    %592 = vrot.lane.b32.xlu0 %v547, 126
    %v593 = vpop.permute.xlu0 %592
    %594 = vrot.lane.b32.xlu0 %v548, 126
    %v595 = vpop.permute.xlu0 %594
    %596 = vrot.lane.b32.xlu0 %v549, 126
    %v597 = vpop.permute.xlu0 %596
    %598 = vrot.lane.b32.xlu0 %v550, 126
    %v599 = vpop.permute.xlu0 %598
    %v600 = vsel %vm90, %v587, %v589
    %v601 = vsel %vm90, %v589, %v591
    %v602 = vsel %vm90, %v591, %v593
    %v603 = vsel %vm90, %v593, %v595
    %v604 = vsel %vm90, %v595, %v597
    %v605 = vsel %vm90, %v597, %v599
    %612 = vrot.lane.b32.xlu0 %v544, 110
    %v613 = vpop.permute.xlu0 %612
    %614 = vrot.lane.b32.xlu0 %v545, 110
    %v615 = vpop.permute.xlu0 %614
    %616 = vrot.lane.b32.xlu0 %v546, 110
    %v617 = vpop.permute.xlu0 %616
    %618 = vrot.lane.b32.xlu0 %v547, 110
    %v619 = vpop.permute.xlu0 %618
    %620 = vrot.lane.b32.xlu0 %v548, 110
    %v621 = vpop.permute.xlu0 %620
    %622 = vrot.lane.b32.xlu0 %v549, 110
    %v623 = vpop.permute.xlu0 %622
    %624 = vrot.lane.b32.xlu0 %v550, 110
    %v625 = vpop.permute.xlu0 %624
    %v626 = vsel %vm118, %v613, %v615
    %v627 = vsel %vm118, %v615, %v617
    %v628 = vsel %vm118, %v617, %v619
    %v629 = vsel %vm118, %v619, %v621
    %v630 = vsel %vm118, %v621, %v623
    %v631 = vsel %vm118, %v623, %v625
    %638 = vrot.lane.b32.xlu0 %v544, 109
    %v639 = vpop.permute.xlu0 %638
    %640 = vrot.lane.b32.xlu0 %v545, 109
    %v641 = vpop.permute.xlu0 %640
    %642 = vrot.lane.b32.xlu0 %v546, 109
    %v643 = vpop.permute.xlu0 %642
    %644 = vrot.lane.b32.xlu0 %v547, 109
    %v645 = vpop.permute.xlu0 %644
    %646 = vrot.lane.b32.xlu0 %v548, 109
    %v647 = vpop.permute.xlu0 %646
    %648 = vrot.lane.b32.xlu0 %v549, 109
    %v649 = vpop.permute.xlu0 %648
    %650 = vrot.lane.b32.xlu0 %v550, 109
    %v651 = vpop.permute.xlu0 %650
    %v652 = vsel %vm146, %v639, %v641
    %v653 = vsel %vm146, %v641, %v643
    %v654 = vsel %vm146, %v643, %v645
    %v655 = vsel %vm146, %v645, %v647
    %v656 = vsel %vm146, %v647, %v649
    %v657 = vsel %vm146, %v649, %v651
    %664 = vrot.lane.b32.xlu0 %v544, 108
    %v665 = vpop.permute.xlu0 %664
    %666 = vrot.lane.b32.xlu0 %v545, 108
    %v667 = vpop.permute.xlu0 %666
    %668 = vrot.lane.b32.xlu0 %v546, 108
    %v669 = vpop.permute.xlu0 %668
    %670 = vrot.lane.b32.xlu0 %v547, 108
    %v671 = vpop.permute.xlu0 %670
    %672 = vrot.lane.b32.xlu0 %v548, 108
    %v673 = vpop.permute.xlu0 %672
    %674 = vrot.lane.b32.xlu0 %v549, 108
    %v675 = vpop.permute.xlu0 %674
    %676 = vrot.lane.b32.xlu0 %v550, 108
    %v677 = vpop.permute.xlu0 %676
    %v678 = vsel %vm174, %v665, %v667
    %v679 = vsel %vm174, %v667, %v669
    %v680 = vsel %vm174, %v669, %v671
    %v681 = vsel %vm174, %v671, %v673
    %v682 = vsel %vm174, %v673, %v675
    %v683 = vsel %vm174, %v675, %v677
    %690 = vrot.lane.b32.xlu0 %v544, 92
    %v691 = vpop.permute.xlu0 %690
    %692 = vrot.lane.b32.xlu0 %v545, 92
    %v693 = vpop.permute.xlu0 %692
    %694 = vrot.lane.b32.xlu0 %v546, 92
    %v695 = vpop.permute.xlu0 %694
    %696 = vrot.lane.b32.xlu0 %v547, 92
    %v697 = vpop.permute.xlu0 %696
    %698 = vrot.lane.b32.xlu0 %v548, 92
    %v699 = vpop.permute.xlu0 %698
    %700 = vrot.lane.b32.xlu0 %v549, 92
    %v701 = vpop.permute.xlu0 %700
    %702 = vrot.lane.b32.xlu0 %v550, 92
    %v703 = vpop.permute.xlu0 %702
    %v704 = vsel %vm202, %v691, %v693
    %v705 = vsel %vm202, %v693, %v695
    %v706 = vsel %vm202, %v695, %v697
    %v707 = vsel %vm202, %v697, %v699
    %v708 = vsel %vm202, %v699, %v701
    %v709 = vsel %vm202, %v701, %v703
    %716 = vrot.lane.b32.xlu0 %v544, 91
    %v717 = vpop.permute.xlu0 %716
    %718 = vrot.lane.b32.xlu0 %v545, 91
    %v719 = vpop.permute.xlu0 %718
    %720 = vrot.lane.b32.xlu0 %v546, 91
    %v721 = vpop.permute.xlu0 %720
    %722 = vrot.lane.b32.xlu0 %v547, 91
    %v723 = vpop.permute.xlu0 %722
    %724 = vrot.lane.b32.xlu0 %v548, 91
    %v725 = vpop.permute.xlu0 %724
    %726 = vrot.lane.b32.xlu0 %v549, 91
    %v727 = vpop.permute.xlu0 %726
    %728 = vrot.lane.b32.xlu0 %v550, 91
    %v729 = vpop.permute.xlu0 %728
    %v730 = vsel %vm230, %v717, %v719
    %v731 = vsel %vm230, %v719, %v721
    %v732 = vsel %vm230, %v721, %v723
    %v733 = vsel %vm230, %v723, %v725
    %v734 = vsel %vm230, %v725, %v727
    %v735 = vsel %vm230, %v727, %v729
    %742 = vrot.lane.b32.xlu0 %v544, 90
    %v743 = vpop.permute.xlu0 %742
    %744 = vrot.lane.b32.xlu0 %v545, 90
    %v745 = vpop.permute.xlu0 %744
    %746 = vrot.lane.b32.xlu0 %v546, 90
    %v747 = vpop.permute.xlu0 %746
    %748 = vrot.lane.b32.xlu0 %v547, 90
    %v749 = vpop.permute.xlu0 %748
    %750 = vrot.lane.b32.xlu0 %v548, 90
    %v751 = vpop.permute.xlu0 %750
    %752 = vrot.lane.b32.xlu0 %v549, 90
    %v753 = vpop.permute.xlu0 %752
    %754 = vrot.lane.b32.xlu0 %v550, 90
    %v755 = vpop.permute.xlu0 %754
    %v756 = vsel %vm258, %v743, %v745
    %v757 = vsel %vm258, %v745, %v747
    %v758 = vsel %vm258, %v747, %v749
    %v759 = vsel %vm258, %v749, %v751
    %v760 = vsel %vm258, %v751, %v753
    %v761 = vsel %vm258, %v753, %v755
    %v768 = vpack.c.bf16 %v574, %v544
    %v769 = vpack.c.bf16 %v575, %v545
    %v770 = vpack.c.bf16 %v576, %v546
    %v771 = vpack.c.bf16 %v577, %v547
    %v772 = vpack.c.bf16 %v578, %v548
    %v773 = vpack.c.bf16 %v579, %v549
    %v774 = vpack.c.bf16 %v626, %v600
    %v775 = vpack.c.bf16 %v627, %v601
    %v776 = vpack.c.bf16 %v628, %v602
    %v777 = vpack.c.bf16 %v629, %v603
    %v778 = vpack.c.bf16 %v630, %v604
    %v779 = vpack.c.bf16 %v631, %v605
    %v780 = vpack.c.bf16 %v678, %v652
    %v781 = vpack.c.bf16 %v679, %v653
    %v782 = vpack.c.bf16 %v680, %v654
    %v783 = vpack.c.bf16 %v681, %v655
    %v784 = vpack.c.bf16 %v682, %v656
    %v785 = vpack.c.bf16 %v683, %v657
    %v786 = vpack.c.bf16 %v730, %v704
    %v787 = vpack.c.bf16 %v731, %v705
    %v788 = vpack.c.bf16 %v732, %v706
    %v789 = vpack.c.bf16 %v733, %v707
    %v790 = vpack.c.bf16 %v734, %v708
    %v791 = vpack.c.bf16 %v735, %v709
    %v792 = vpack.c.bf16 %v756, %v756
    %v793 = vpack.c.bf16 %v757, %v757
    %v794 = vpack.c.bf16 %v758, %v758
    %v795 = vpack.c.bf16 %v759, %v759
    %v796 = vpack.c.bf16 %v760, %v760
    %v797 = vpack.c.bf16 %v761, %v761
    %798 = vset.pattern.permute.xlu0 1
    %799 = vperm.xlu0 %798, %v39
    %v800 = vpop.permute.xlu0 %799
    %v803 = vsel %vm312, %v552, 0
    %v806 = vsel %vm316, %v792, 0
    %v809 = vsel %vm316, %v793, 0
    %v812 = vsel %vm316, %v794, 0
    %v815 = vsel %vm316, %v795, 0
    %v818 = vsel %vm316, %v796, 0
    %v821 = vsel %vm316, %v797, 0
    %823 = vmatprep.subr.bf16.mxu0 %v769
    %824 = vmatpush1.bf16.msra.mxu0 %v768
    %825 = vmatprep.subr.bf16.mxu0 %v775
    %826 = vmatpush1.bf16.msra.mxu0 %v774
    %827 = vmatprep.subr.bf16.mxu0 %v781
    %828 = vmatpush1.bf16.msra.mxu0 %v780
    %829 = vmatprep.subr.bf16.mxu0 %v787
    %830 = vmatpush1.bf16.msra.mxu0 %v786
    %831 = vmatprep.subr.bf16.mxu0 %v809
    %832 = vmatpush1.bf16.msra.mxu0 %v806
    %833 = vmatprep.subr.bf16.mxu0 0
    %834 = vmatpush1.bf16.msra.mxu0 0
    %835 = vmatprep.subr.bf16.mxu0 0
    %836 = vmatpush1.bf16.msra.mxu0 0
    %837 = vmatprep.subr.bf16.mxu0 0
    %838 = vmatpush1.bf16.msra.mxu0 0
    %839 = vmatprep.subr.bf16.mxu0 0
    %840 = vmatpush1.bf16.msra.mxu0 0
    %841 = vmatprep.subr.bf16.mxu0 0
    %842 = vmatpush1.bf16.msra.mxu0 0
    %843 = vmatprep.subr.bf16.mxu0 0
    %844 = vmatpush1.bf16.msra.mxu0 0
    %845 = vmatprep.subr.bf16.mxu0 0
    %846 = vmatpush1.bf16.msra.mxu0 0
    %847 = vmatprep.subr.bf16.mxu0 0
    %848 = vmatpush1.bf16.msra.mxu0 0
    %849 = vmatprep.subr.bf16.mxu0 0
    %850 = vmatpush1.bf16.msra.mxu0 0
    %851 = vmatprep.subr.bf16.mxu0 0
    %852 = vmatpush1.bf16.msra.mxu0 0
    %853 = vmatprep.subr.bf16.mxu0 0
    %854 = vmatpush1.bf16.msra.mxu0 0
    %855 = vmatprep.mubr.bf16.mxu0 0
    %856 = vmatmul.mubr.bf16.gmra.mrb[0].mxu0 %v803
    %v857 = vpop.f32.mrb[0].mxu0
    %v858 = vadd.f32 %v800, %v857
    %v859 = vpop.f32.mrb[0].mxu0
    %v860 = vadd.f32 %v800, %v859
    %v861 = vpop.f32.mrb[0].mxu0
    %v862 = vpop.f32.mrb[0].mxu0
    %863 = vdwg.mxu0
    %864 = vmatprep.subr.bf16.mxu0 %v771
    %865 = vmatpush1.bf16.msra.mxu0 %v770
    %866 = vmatprep.subr.bf16.mxu0 %v777
    %867 = vmatpush1.bf16.msra.mxu0 %v776
    %868 = vmatprep.subr.bf16.mxu0 %v783
    %869 = vmatpush1.bf16.msra.mxu0 %v782
    %870 = vmatprep.subr.bf16.mxu0 %v789
    %871 = vmatpush1.bf16.msra.mxu0 %v788
    %872 = vmatprep.subr.bf16.mxu0 %v815
    %873 = vmatpush1.bf16.msra.mxu0 %v812
    %874 = vmatprep.subr.bf16.mxu0 0
    %875 = vmatpush1.bf16.msra.mxu0 0
    %876 = vmatprep.subr.bf16.mxu0 0
    %877 = vmatpush1.bf16.msra.mxu0 0
    %878 = vmatprep.subr.bf16.mxu0 0
    %879 = vmatpush1.bf16.msra.mxu0 0
    %880 = vmatprep.subr.bf16.mxu0 0
    %881 = vmatpush1.bf16.msra.mxu0 0
    %882 = vmatprep.subr.bf16.mxu0 0
    %883 = vmatpush1.bf16.msra.mxu0 0
    %884 = vmatprep.subr.bf16.mxu0 0
    %885 = vmatpush1.bf16.msra.mxu0 0
    %886 = vmatprep.subr.bf16.mxu0 0
    %887 = vmatpush1.bf16.msra.mxu0 0
    %888 = vmatprep.subr.bf16.mxu0 0
    %889 = vmatpush1.bf16.msra.mxu0 0
    %890 = vmatprep.subr.bf16.mxu0 0
    %891 = vmatpush1.bf16.msra.mxu0 0
    %892 = vmatprep.subr.bf16.mxu0 0
    %893 = vmatpush1.bf16.msra.mxu0 0
    %894 = vmatprep.subr.bf16.mxu0 0
    %895 = vmatpush1.bf16.msra.mxu0 0
    %896 = vmatprep.mubr.bf16.mxu0 0
    %897 = vmatmul.mubr.bf16.gmra.mrb[0].mxu0 %v803
    %v898 = vpop.f32.mrb[0].mxu0
    %v899 = vadd.f32 %v800, %v898
    %v900 = vpop.f32.mrb[0].mxu0
    %v901 = vadd.f32 %v800, %v900
    %v902 = vpop.f32.mrb[0].mxu0
    %v903 = vpop.f32.mrb[0].mxu0
    %904 = vdwg.mxu0
    %905 = vmatprep.subr.bf16.mxu0 %v773
    %906 = vmatpush1.bf16.msra.mxu0 %v772
    %907 = vmatprep.subr.bf16.mxu0 %v779
    %908 = vmatpush1.bf16.msra.mxu0 %v778
    %909 = vmatprep.subr.bf16.mxu0 %v785
    %910 = vmatpush1.bf16.msra.mxu0 %v784
    %911 = vmatprep.subr.bf16.mxu0 %v791
    %912 = vmatpush1.bf16.msra.mxu0 %v790
    %913 = vmatprep.subr.bf16.mxu0 %v821
    %914 = vmatpush1.bf16.msra.mxu0 %v818
    %915 = vmatprep.subr.bf16.mxu0 0
    %916 = vmatpush1.bf16.msra.mxu0 0
    %917 = vmatprep.subr.bf16.mxu0 0
    %918 = vmatpush1.bf16.msra.mxu0 0
    %919 = vmatprep.subr.bf16.mxu0 0
    %920 = vmatpush1.bf16.msra.mxu0 0
    %921 = vmatprep.subr.bf16.mxu0 0
    %922 = vmatpush1.bf16.msra.mxu0 0
    %923 = vmatprep.subr.bf16.mxu0 0
    %924 = vmatpush1.bf16.msra.mxu0 0
    %925 = vmatprep.subr.bf16.mxu0 0
    %926 = vmatpush1.bf16.msra.mxu0 0
    %927 = vmatprep.subr.bf16.mxu0 0
    %928 = vmatpush1.bf16.msra.mxu0 0
    %929 = vmatprep.subr.bf16.mxu0 0
    %930 = vmatpush1.bf16.msra.mxu0 0
    %931 = vmatprep.subr.bf16.mxu0 0
    %932 = vmatpush1.bf16.msra.mxu0 0
    %933 = vmatprep.subr.bf16.mxu0 0
    %934 = vmatpush1.bf16.msra.mxu0 0
    %935 = vmatprep.subr.bf16.mxu0 0
    %936 = vmatpush1.bf16.msra.mxu0 0
    %937 = vmatprep.mubr.bf16.mxu0 0
    %938 = vmatmul.mubr.bf16.gmra.mrb[0].mxu0 %v803
    %v939 = vpop.f32.mrb[0].mxu0
    %v940 = vadd.f32 %v800, %v939
    %v941 = vpop.f32.mrb[0].mxu0
    %v942 = vadd.f32 %v800, %v941
    %v943 = vpop.f32.mrb[0].mxu0
    %v944 = vpop.f32.mrb[0].mxu0
    %945 = vdwg.mxu0
    %v946 = vadd.f32 %v858, %v259
    %v947 = vadd.f32 %v860, %v260
    %v948 = vadd.f32 %v899, %v261
    %v949 = vadd.f32 %v901, %v262
    %v950 = vadd.f32 %v940, %v263
    %v951 = vadd.f32 %v942, %v264
    %v952 = vmax.f32 %v946, 0.0
    %v953 = vmax.f32 %v947, 0.0
    %v954 = vmax.f32 %v948, 0.0
    %v955 = vmax.f32 %v949, 0.0
    %v956 = vmax.f32 %v950, 0.0
    %v957 = vmax.f32 %v951, 0.0
    %958 = vst [vmem:[#allocation5] sm:$0xff] %v952
    %959 = vst [vmem:[#allocation5 + $0x8] sm:$0xff] %v953
    %960 = vst [vmem:[#allocation5 + $0x10] sm:$0xff] %v954
    %961 = vst [vmem:[#allocation5 + $0x18] sm:$0xff] %v955
    %962 = vst [vmem:[#allocation5 + $0x20] sm:$0xff] %v956
    %963 = vst [vmem:[#allocation5 + $0x28] sm:$0xff] %v957
    // Predicated region
    $region22: #{tpu_custom_call.1} parent=1 // pred_check
      _
    $region23: #{tpu_custom_call.1} parent=1 // pred_check_branch
      %965 = sbr.rel (0) target = $region25
    $region24: #{tpu_custom_call.1} parent=1 // pred_region
      %s967 = ssub.s32 768, 768
      %968 = vsyncadd [#allocation4], %s967
      %s970 = sshll.u32 [#allocation5], 4
      %s971 = int_to_ptr.vmem [resolvable:$true] %s970
      %973 = dma.vmem_to_hbm [thread:$0]  %s971, 768, %s4, [#allocation4]
    $region25: #{tpu_custom_call.1} parent=1 // pred_fallthru
      _
    // Predicated region
    $region26: #{tpu_custom_call.1} parent=1 // pred_check
      _
    $region27: #{tpu_custom_call.1} parent=1 // pred_check_branch
      %975 = sbr.rel (0) target = $region29
    $region28: #{tpu_custom_call.1} parent=1 // pred_region
      %976 = dma.done [#allocation4], 768
    $region29: #{tpu_custom_call.1} parent=1 // pred_fallthru
      _
    %977 = vsyncpa [#allocation3], 1
    %978 = vsyncpa [#allocation4], 1

</llo_original>
